<compile_context>
chip_gen: v5e
topology: v5e:2x2
jax: 0.10.0
libtpu: 0.0.40
codegen_flags: <defaults>
</compile_context>

<pallas_src>
import jax
import jax.numpy as jnp
from jax.experimental import pallas as pl
from jax.experimental.pallas import tpu as pltpu

_PACK = 4  # logical rows folded per physical row: K=96 -> 384 lanes, D=32 -> 128 lanes


def _relation_kernel(x_ref, w_ref, b_ref, o_ref):
    # x_ref: (tm, Kp) f32   w_ref: (Kp, Np) bf16   b_ref: (1, Np) f32
    # o_ref: (tm, Np) f32 or bf16
    x = x_ref[...].astype(jnp.bfloat16)            # in-kernel cast rides slack VPU slots
    y = jnp.dot(x, w_ref[...], preferred_element_type=jnp.float32)
    y = y + b_ref[...]                             # bias add in f32
    o_ref[...] = jnp.maximum(y, 0.0).astype(o_ref.dtype)


def _round_up(x, m):
    return ((x + m - 1) // m) * m


def _relation_packed(x2d, weight, bias, *, block_rows, out_dtype):
    """Lane-dense pack=4 path.  Requires x2d.shape[0] % 4 == 0 and > 0."""
    M, K = x2d.shape
    D = weight.shape[0]
    pack = _PACK
    Kp, Np, Mr = pack * K, pack * D, M // pack

    # Row-major reshape is a free view -- no HBM pass, no dtype cast.
    x_packed = x2d.reshape(Mr, Kp)

    # Block-diagonal weight makes the packed matmul equal `pack` independent
    # x @ W.T products.  Tiny (384x128 bf16 ~ 96 KiB) and VMEM-resident.
    w_t = weight.T.astype(jnp.float32)                               # (K, D)
    w_blockdiag = jnp.kron(jnp.eye(pack, dtype=jnp.float32), w_t)    # (Kp, Np)
    w_blockdiag = w_blockdiag.astype(jnp.bfloat16)
    b_packed = jnp.tile(bias.astype(jnp.float32), pack).reshape(1, Np)

    # --- tile-size selection -------------------------------------------------
    out_bytes = jnp.dtype(out_dtype).itemsize
    sub = 8 if out_bytes >= 4 else 16                       # sublane granularity
    tm_cap = max(sub, (block_rows // pack) // sub * sub)    # VMEM-budget cap (default 4096)
    tm_floor = min(512, tm_cap)                             # amortize ~0.35us/step overhead
    # Aim for >= 8 grid steps on medium M so v7x megacore sharding stays balanced,
    # but never drop below tm_floor and never exceed the VMEM cap or the array.
    tm = _round_up(pl.cdiv(Mr, 8), sub)
    tm = max(min(tm, tm_cap), tm_floor)
    tm = min(tm, _round_up(Mr, sub))
    grid = (pl.cdiv(Mr, tm),)

    cost = pl.CostEstimate(
        flops=2 * Mr * Kp * Np,
        transcendentals=0,
        bytes_accessed=4 * Mr * Kp + out_bytes * Mr * Np + 2 * Kp * Np + 4 * Np,
    )

    out = pl.pallas_call(
        _relation_kernel,
        out_shape=jax.ShapeDtypeStruct((Mr, Np), out_dtype),
        grid_spec=pltpu.PrefetchScalarGridSpec(
            num_scalar_prefetch=0,
            grid=grid,
            in_specs=[
                pl.BlockSpec((tm, Kp), lambda i: (i, 0)),   # f32 rows, tiled
                pl.BlockSpec((Kp, Np), lambda i: (0, 0)),   # bf16 weight, resident
                pl.BlockSpec((1, Np), lambda i: (0, 0)),    # f32 bias, resident
            ],
            out_specs=pl.BlockSpec((tm, Np), lambda i: (i, 0)),
        ),
        compiler_params=pltpu.CompilerParams(
            dimension_semantics=("parallel",),          # megacore sharding on v7x
            vmem_limit_bytes=32 * 1024 * 1024,          # explicit budget; ~16 MiB used
        ),
        cost_estimate=cost,
    )(x_packed, w_blockdiag, b_packed)

    # (Mr, pack*D) row-major is exactly (M, D) row-major -> free reshape.
    return out.reshape(M, D)


def relation_network(input_fused, weight, bias, *, block_rows=16384,
                     out_dtype=jnp.float32):
    """Pallas equivalent of PyTorch `ReLU(nn.Linear(3*D, D)(input_fused))`.

    input_fused: (..., 3*D) float32
    weight:      (D, 3*D)   float32   (PyTorch nn.Linear layout; y = x @ W.T + b)
    bias:        (D,)       float32
    returns:     (..., D)   out_dtype (default float32)
    """
    orig_shape = input_fused.shape
    K = orig_shape[-1]
    D = weight.shape[0]
    assert weight.shape == (D, K)

    x2d = input_fused.reshape(-1, K)
    M = x2d.shape[0]
    M4 = (M // _PACK) * _PACK

    if M4 == 0:
        # Degenerate tiny input (< 4 rows): plain XLA is cheapest.
        out2d = jnp.maximum(x2d @ weight.T + bias, 0.0).astype(out_dtype)
    elif M4 == M:
        out2d = _relation_packed(x2d, weight, bias,
                                 block_rows=block_rows, out_dtype=out_dtype)
    else:
        # Ragged tail (<= 3 rows): lane-dense kernel on the bulk, XLA on the
        # tail -- keeps unmasked 128-lane stores for ~100% of the data instead
        # of falling back to masked 32/64-lane stores for the whole tensor.
        main = _relation_packed(x2d[:M4], weight, bias,
                                block_rows=block_rows, out_dtype=out_dtype)
        tail = jnp.maximum(x2d[M4:] @ weight.T + bias, 0.0).astype(out_dtype)
        out2d = jnp.concatenate([main, tail], axis=0)

    return out2d.reshape(orig_shape[:-1] + (D,))


if __name__ == "__main__":
    # Module config: dim_relation=32, fuse_method='cat' -> input_dim = 3*32 = 96
    dim_relation = 32
    input_dim = 3 * dim_relation

    key = jax.random.PRNGKey(0)
    kx, kw, kb, kx2, kx3 = jax.random.split(key, 5)

    # PyTorch nn.Linear default init: U(-1/sqrt(fan_in), +1/sqrt(fan_in))
    bound = 1.0 / jnp.sqrt(jnp.float32(input_dim))
    weight = jax.random.uniform(kw, (dim_relation, input_dim),
                                minval=-bound, maxval=bound, dtype=jnp.float32)
    bias = jax.random.uniform(kb, (dim_relation,),
                              minval=-bound, maxval=bound, dtype=jnp.float32)

    def ref_fn(x):
        return jnp.maximum(x @ weight.T + bias, 0.0)

    # Case 1: small, M % 4 == 0 -> single-step lane-dense path.
    x1 = jax.random.normal(kx, (2, 8, input_dim), dtype=jnp.float32)
    out1 = jax.block_until_ready(relation_network(x1, weight, bias))
    assert out1.shape == (2, 8, dim_relation)
    assert jnp.allclose(out1, ref_fn(x1), atol=2e-2, rtol=2e-2), "case1 mismatch"

    # Case 2: ragged M (3*7 = 21) -> kernel on first 20 rows + XLA tail.
    x2 = jax.random.normal(kx2, (3, 7, input_dim), dtype=jnp.float32)
    out2 = jax.block_until_ready(relation_network(x2, weight, bias))
    assert out2.shape == (3, 7, dim_relation)
    assert jnp.allclose(out2, ref_fn(x2), atol=2e-2, rtol=2e-2), "case2 mismatch"

    # Case 3: multi-step grid (M=4096 -> Mr=1024, tm=512, 2 grid steps).
    x3 = jax.random.normal(kx3, (8, 512, input_dim), dtype=jnp.float32)
    out3 = jax.block_until_ready(relation_network(x3, weight, bias))
    assert out3.shape == (8, 512, dim_relation)
    assert jnp.allclose(out3, ref_fn(x3), atol=2e-2, rtol=2e-2), "case3 mismatch"

    # Case 4: optional bf16-output variant (half the writeback traffic).
    out4 = jax.block_until_ready(
        relation_network(x1, weight, bias, out_dtype=jnp.bfloat16))
    assert out4.dtype == jnp.bfloat16
    assert jnp.allclose(out4.astype(jnp.float32), ref_fn(x1),
                        atol=5e-2, rtol=5e-2), "case4 mismatch"

    print("KERNEL_OK")
</pallas_src>

<mosaic_0001>
module attributes {stable_mosaic.version = 11 : i64} {
  func.func @_relation_kernel(%arg0: i32, %arg1: memref<8x384xf32, #tpu.memory_space<vmem>>, %arg2: memref<384x128xbf16, #tpu.memory_space<vmem>>, %arg3: memref<1x128xf32, #tpu.memory_space<vmem>>, %arg4: memref<8x128xf32, #tpu.memory_space<vmem>>) attributes {dimension_semantics = [#tpu.dimension_semantics<parallel>], iteration_bounds = array<i64: 1>, scalar_prefetch = 0 : i64, scratch_operands = 0 : i64, tpu.core_type = #tpu.core_type<tc>, window_params = [{transform_indices = @transform_0, window_bounds = array<i64: 8, 384>}, {pipeline_mode = #tpu.pipeline_mode<synchronous>, transform_indices = @transform_1, window_bounds = array<i64: 384, 128>}, {pipeline_mode = #tpu.pipeline_mode<synchronous>, transform_indices = @transform_2, window_bounds = array<i64: 1, 128>}, {transform_indices = @transform_3, window_bounds = array<i64: 8, 128>}]} {
    %c0 = arith.constant 0 : index
    %c0_0 = arith.constant 0 : index
    %0 = vector.load %arg1[%c0, %c0_0] : memref<8x384xf32, #tpu.memory_space<vmem>>, vector<8x384xf32>
    %1 = arith.truncf %0 : vector<8x384xf32> to vector<8x384xbf16>
    %c0_1 = arith.constant 0 : index
    %c0_2 = arith.constant 0 : index
    %2 = vector.load %arg2[%c0_1, %c0_2] : memref<384x128xbf16, #tpu.memory_space<vmem>>, vector<384x128xbf16>
    %cst = arith.constant dense<0.000000e+00> : vector<8x128xf32>
    %3 = tpu.matmul %1, %2, %cst {dimension_numbers = #tpu.dot_dimension_numbers<[1], [0], [0], [1], [0, 0, 1, 1], [], []>} : vector<8x384xbf16>, vector<384x128xbf16>, vector<8x128xf32> -> vector<8x128xf32>
    %c0_3 = arith.constant 0 : index
    %c0_4 = arith.constant 0 : index
    %4 = vector.load %arg3[%c0_3, %c0_4] : memref<1x128xf32, #tpu.memory_space<vmem>>, vector<1x128xf32>
    %5 = vector.broadcast %4 : vector<1x128xf32> to vector<8x128xf32>
    %6 = arith.addf %3, %5 : vector<8x128xf32>
    %cst_5 = arith.constant 0.000000e+00 : f32
    %7 = vector.broadcast %cst_5 : f32 to vector<8x128xf32>
    %8 = arith.maximumf %6, %7 : vector<8x128xf32>
    %c0_6 = arith.constant 0 : index
    %c0_7 = arith.constant 0 : index
    %9 = vector.load %arg4[%c0_6, %c0_7] : memref<8x128xf32, #tpu.memory_space<vmem>>, vector<8x128xf32>
    tpu.vector_store %arg4[%c0_6, %c0_7], %8 {strides = array<i32>} : memref<8x128xf32, #tpu.memory_space<vmem>>, vector<8x128xf32>,
    return
  }
  func.func @transform_0(%arg0: i32) -> (i32, i32) {
    %c0_i32 = arith.constant 0 : i32
    %c0_i32_0 = arith.constant 0 : i32
    return %arg0, %c0_i32 : i32, i32
  }
  func.func @transform_1(%arg0: i32) -> (i32, i32) {
    %c0_i32 = arith.constant 0 : i32
    %c0_i32_0 = arith.constant 0 : i32
    %c0_i32_1 = arith.constant 0 : i32
    return %c0_i32, %c0_i32_0 : i32, i32
  }
  func.func @transform_2(%arg0: i32) -> (i32, i32) {
    %c0_i32 = arith.constant 0 : i32
    %c0_i32_0 = arith.constant 0 : i32
    %c0_i32_1 = arith.constant 0 : i32
    return %c0_i32, %c0_i32_0 : i32, i32
  }
  func.func @transform_3(%arg0: i32) -> (i32, i32) {
    %c0_i32 = arith.constant 0 : i32
    %c0_i32_0 = arith.constant 0 : i32
    return %arg0, %c0_i32 : i32, i32
  }
}

</mosaic_0001>

<llo_original>
// kernel: tpu_custom_call.1
$region0: #{tpu_custom_call.1}
  #allocation0 [shape = 'u32[]', space=smem, size = 0x4, offset = 0x4, fixed_abs, tag = 'smem constant byte address 0x4 - core index']
  #allocation1 [shape = 'u32[72,128]{1,0:T(1,128)}', space=vmem, size = 0x9000, scoped, tag = 'internal scratch']
  %s0 = inlined_call_operand.hbm [shape: f32[4,384], index: 0, kind: input, shape index: {}]
  %s1 = inlined_call_operand.hbm [shape: bf16[384,128], index: 1, kind: input, shape index: {}]
  %s2 = inlined_call_operand.vmem [shape: f32[1,128], index: 2, kind: input, shape index: {}]
  %s3 = inlined_call_operand.hbm [shape: f32[4,128], index: 3, kind: output, shape index: {}]
  %s4 = sld [smem:[#allocation0]]
  $region30: #{tpu_custom_call.1} parent=0
    _
  %s6 = ssub.s32 1, %s4
  %s7 = scalar_select 0, %s6, %s4
  $region1: #{tpu_custom_call.1} parent=0
    #allocation2 [shape = 'u8[12288]{0}', space=vmem, size = 0x3000, scoped, tag = 'input window, operand 0, single buffered']
    #allocation3 [shape = 's32[1]{0}', space=sflag, size = 0x4, scoped, tag = 'scoped memory for tpu_custom_call.1']
    #allocation4 [shape = 's32[1]{0}', space=sflag, size = 0x4, scoped, tag = 'scoped memory for tpu_custom_call.1']
    #allocation5 [shape = 'u8[98304]{0}', space=vmem, size = 0x18000, scoped, tag = 'input window, operand 1, single buffered']
    #allocation6 [shape = 's32[1]{0}', space=sflag, size = 0x4, scoped, tag = 'scoped memory for tpu_custom_call.1']
    #allocation7 [shape = 'u8[4096]{0}', space=vmem, size = 0x1000, scoped, tag = 'output window, operand 0, single buffered']
    %8 = vsyncpa [#allocation3], 0
    %9 = vsyncpa [#allocation6], 0
    %10 = vsyncpa [#allocation4], 0
    // Predicated region
    $region2: #{tpu_custom_call.1} parent=1 // pred_check
      _
    $region3: #{tpu_custom_call.1} parent=1 // pred_check_branch
      %12 = sbr.rel (0) target = $region5
    $region4: #{tpu_custom_call.1} parent=1 // pred_region
      %14 = vsyncadd [#allocation3], 192
      %s15 = sshll.u32 %s0, 4
      %s16 = int_to_ptr.hbm [resolvable:$true] %s15
      %s17 = sshll.u32 [#allocation2], 4
      %s18 = int_to_ptr.vmem [resolvable:$true] %s17
      %23 = dma.hbm_to_vmem [thread:$0]  %s16, 192, %s18, [#allocation3], 192, 192, 12
    $region5: #{tpu_custom_call.1} parent=1 // pred_fallthru
      _
    // Predicated region
    $region6: #{tpu_custom_call.1} parent=1 // pred_check
      _
    $region7: #{tpu_custom_call.1} parent=1 // pred_check_branch
      %25 = sbr.rel (0) target = $region9
    $region8: #{tpu_custom_call.1} parent=1 // pred_region
      %27 = vsyncadd [#allocation6], 0
      %s28 = sshll.u32 %s1, 4
      %s29 = int_to_ptr.hbm [resolvable:$true] %s28
      %s30 = sshll.u32 [#allocation5], 4
      %s31 = int_to_ptr.vmem [resolvable:$true] %s30
      %36 = dma.hbm_to_vmem [thread:$0]  %s29, 3072, %s31, [#allocation6], 64, 64, 4
    $region9: #{tpu_custom_call.1} parent=1 // pred_fallthru
      _
    // Predicated region
    $region10: #{tpu_custom_call.1} parent=1 // pred_check
      _
    $region11: #{tpu_custom_call.1} parent=1 // pred_check_branch
      %38 = sbr.rel (0) target = $region13
    $region12: #{tpu_custom_call.1} parent=1 // pred_region
      _
    $region13: #{tpu_custom_call.1} parent=1 // pred_fallthru
      _
    // Predicated region
    $region14: #{tpu_custom_call.1} parent=1 // pred_check
      _
    $region15: #{tpu_custom_call.1} parent=1 // pred_check_branch
      %40 = sbr.rel (0) target = $region17
    $region16: #{tpu_custom_call.1} parent=1 // pred_region
      %42 = dma.done [#allocation3], 384
    $region17: #{tpu_custom_call.1} parent=1 // pred_fallthru
      _
    // Predicated region
    $region18: #{tpu_custom_call.1} parent=1 // pred_check
      _
    $region19: #{tpu_custom_call.1} parent=1 // pred_check_branch
      %44 = sbr.rel (0) target = $region21
    $region20: #{tpu_custom_call.1} parent=1 // pred_region
      %46 = dma.done [#allocation6], 3072
    $region21: #{tpu_custom_call.1} parent=1 // pred_fallthru
      _
    %v47 = vld [vmem:[#allocation2] sm:$0xff]
    %v48 = vld [vmem:[#allocation2 + $0x8] sm:$0xf]
    %v49 = vld [vmem:[#allocation2 + $0xc] sm:$0xff]
    %v50 = vld [vmem:[#allocation2 + $0x14] sm:$0xf]
    %55 = vst [vmem:[#allocation1] ss:$2 sm:$0xff] %v47
    %s56 = scalar_lea.vmem [#allocation1], 1
    %57 = vst [vmem:[%s56] ss:$2 sm:$0xff] %v49
    %s58 = scalar_lea.vmem [#allocation1], 16
    %59 = vst [vmem:[%s58] ss:$2 sm:$0xff] %v48
    %s60 = scalar_lea.vmem [#allocation1], 17
    %61 = vst [vmem:[%s60] ss:$2 sm:$0xff] %v50
    %v62 = vld.sshfl [vmem:[#allocation1] sm:$0xff pattern:$0x75316420]
    %v63 = vld.sshfl [vmem:[#allocation1 + $0x8] sm:$0xff pattern:$0x75316420]
    %v64 = vld.sshfl [vmem:[#allocation1 + $0x10] sm:$0xff pattern:$0x75316420]
    %v68 = vpack.c.bf16 %v62, %v62
    %v69 = vpack.c.bf16 %v63, %v63
    %v70 = vpack.c.bf16 %v64, %v64
    %v71 = vld [vmem:[#allocation5] sm:$0xf]
    %v72 = vld [vmem:[#allocation5 + $0x4] sm:$0xf]
    %v73 = vld [vmem:[#allocation5 + $0x8] sm:$0xf]
    %v74 = vld [vmem:[#allocation5 + $0xc] sm:$0xf]
    %v75 = vld [vmem:[#allocation5 + $0x10] sm:$0xf]
    %v76 = vld [vmem:[#allocation5 + $0x14] sm:$0xf]
    %v77 = vld [vmem:[#allocation5 + $0x18] sm:$0xf]
    %v78 = vld [vmem:[#allocation5 + $0x1c] sm:$0xf]
    %v79 = vld [vmem:[#allocation5 + $0x20] sm:$0xf]
    %v80 = vld [vmem:[#allocation5 + $0x24] sm:$0xf]
    %v81 = vld [vmem:[#allocation5 + $0x28] sm:$0xf]
    %v82 = vld [vmem:[#allocation5 + $0x2c] sm:$0xf]
    %v83 = vld [vmem:[#allocation5 + $0x30] sm:$0xf]
    %v84 = vld [vmem:[#allocation5 + $0x34] sm:$0xf]
    %v85 = vld [vmem:[#allocation5 + $0x38] sm:$0xf]
    %v86 = vld [vmem:[#allocation5 + $0x3c] sm:$0xf]
    %v87 = vld [vmem:[#allocation5 + $0x40] sm:$0xf]
    %v88 = vld [vmem:[#allocation5 + $0x44] sm:$0xf]
    %v89 = vld [vmem:[#allocation5 + $0x48] sm:$0xf]
    %v90 = vld [vmem:[#allocation5 + $0x4c] sm:$0xf]
    %v91 = vld [vmem:[#allocation5 + $0x50] sm:$0xf]
    %v92 = vld [vmem:[#allocation5 + $0x54] sm:$0xf]
    %v93 = vld [vmem:[#allocation5 + $0x58] sm:$0xf]
    %v94 = vld [vmem:[#allocation5 + $0x5c] sm:$0xf]
    %v95 = vld [vmem:[#allocation5 + $0x60] sm:$0xf]
    %v96 = vld [vmem:[#allocation5 + $0x64] sm:$0xf]
    %v97 = vld [vmem:[#allocation5 + $0x68] sm:$0xf]
    %v98 = vld [vmem:[#allocation5 + $0x6c] sm:$0xf]
    %v99 = vld [vmem:[#allocation5 + $0x70] sm:$0xf]
    %v100 = vld [vmem:[#allocation5 + $0x74] sm:$0xf]
    %v101 = vld [vmem:[#allocation5 + $0x78] sm:$0xf]
    %v102 = vld [vmem:[#allocation5 + $0x7c] sm:$0xf]
    %v103 = vld [vmem:[#allocation5 + $0x80] sm:$0xf]
    %v104 = vld [vmem:[#allocation5 + $0x84] sm:$0xf]
    %v105 = vld [vmem:[#allocation5 + $0x88] sm:$0xf]
    %v106 = vld [vmem:[#allocation5 + $0x8c] sm:$0xf]
    %v107 = vld [vmem:[#allocation5 + $0x90] sm:$0xf]
    %v108 = vld [vmem:[#allocation5 + $0x94] sm:$0xf]
    %v109 = vld [vmem:[#allocation5 + $0x98] sm:$0xf]
    %v110 = vld [vmem:[#allocation5 + $0x9c] sm:$0xf]
    %v111 = vld [vmem:[#allocation5 + $0xa0] sm:$0xf]
    %v112 = vld [vmem:[#allocation5 + $0xa4] sm:$0xf]
    %v113 = vld [vmem:[#allocation5 + $0xa8] sm:$0xf]
    %v114 = vld [vmem:[#allocation5 + $0xac] sm:$0xf]
    %v115 = vld [vmem:[#allocation5 + $0xb0] sm:$0xf]
    %v116 = vld [vmem:[#allocation5 + $0xb4] sm:$0xf]
    %v117 = vld [vmem:[#allocation5 + $0xb8] sm:$0xf]
    %v118 = vld [vmem:[#allocation5 + $0xbc] sm:$0xf]
    %v119 = vld [vmem:[%s2] sm:$0x1]
    %v121 = vperm.slane %v119, 0
    %v171 = vunpack.c.l.b16 %v71
    %v172 = vunpack.c.l.b16 %v72
    %v173 = vunpack.c.l.b16 %v73
    %v174 = vunpack.c.l.b16 %v74
    %v175 = vunpack.c.l.b16 %v75
    %v176 = vunpack.c.l.b16 %v76
    %v177 = vunpack.c.l.b16 %v77
    %v178 = vunpack.c.l.b16 %v78
    %v179 = vunpack.c.l.b16 %v79
    %v180 = vunpack.c.l.b16 %v80
    %v181 = vunpack.c.l.b16 %v81
    %v182 = vunpack.c.l.b16 %v82
    %v183 = vunpack.c.l.b16 %v83
    %v184 = vunpack.c.l.b16 %v84
    %v185 = vunpack.c.l.b16 %v85
    %v186 = vunpack.c.l.b16 %v86
    %v187 = vunpack.c.l.b16 %v87
    %v188 = vunpack.c.l.b16 %v88
    %v189 = vunpack.c.l.b16 %v89
    %v190 = vunpack.c.l.b16 %v90
    %v191 = vunpack.c.l.b16 %v91
    %v192 = vunpack.c.l.b16 %v92
    %v193 = vunpack.c.l.b16 %v93
    %v194 = vunpack.c.l.b16 %v94
    %v195 = vunpack.c.l.b16 %v95
    %v196 = vunpack.c.l.b16 %v96
    %v197 = vunpack.c.l.b16 %v97
    %v198 = vunpack.c.l.b16 %v98
    %v199 = vunpack.c.l.b16 %v99
    %v200 = vunpack.c.l.b16 %v100
    %v201 = vunpack.c.l.b16 %v101
    %v202 = vunpack.c.l.b16 %v102
    %v203 = vunpack.c.l.b16 %v103
    %v204 = vunpack.c.l.b16 %v104
    %v205 = vunpack.c.l.b16 %v105
    %v206 = vunpack.c.l.b16 %v106
    %v207 = vunpack.c.l.b16 %v107
    %v208 = vunpack.c.l.b16 %v108
    %v209 = vunpack.c.l.b16 %v109
    %v210 = vunpack.c.l.b16 %v110
    %v211 = vunpack.c.l.b16 %v111
    %v212 = vunpack.c.l.b16 %v112
    %v213 = vunpack.c.l.b16 %v113
    %v214 = vunpack.c.l.b16 %v114
    %v215 = vunpack.c.l.b16 %v115
    %v216 = vunpack.c.l.b16 %v116
    %v217 = vunpack.c.l.b16 %v117
    %v218 = vunpack.c.l.b16 %v118
    %v219 = vpack.c.b16 %v172, %v171
    %v220 = vpack.c.b16 %v174, %v173
    %v221 = vpack.c.b16 %v176, %v175
    %v222 = vpack.c.b16 %v178, %v177
    %v223 = vpack.c.b16 %v180, %v179
    %v224 = vpack.c.b16 %v182, %v181
    %v225 = vpack.c.b16 %v184, %v183
    %v226 = vpack.c.b16 %v186, %v185
    %v227 = vpack.c.b16 %v188, %v187
    %v228 = vpack.c.b16 %v190, %v189
    %v229 = vpack.c.b16 %v192, %v191
    %v230 = vpack.c.b16 %v194, %v193
    %v231 = vpack.c.b16 %v196, %v195
    %v232 = vpack.c.b16 %v198, %v197
    %v233 = vpack.c.b16 %v200, %v199
    %v234 = vpack.c.b16 %v202, %v201
    %v235 = vpack.c.b16 %v204, %v203
    %v236 = vpack.c.b16 %v206, %v205
    %v237 = vpack.c.b16 %v208, %v207
    %v238 = vpack.c.b16 %v210, %v209
    %v239 = vpack.c.b16 %v212, %v211
    %v240 = vpack.c.b16 %v214, %v213
    %v241 = vpack.c.b16 %v216, %v215
    %v242 = vpack.c.b16 %v218, %v217
    %267 = vmatpush.bf16.msra.mxu0 %v226
    %268 = vmatpush.bf16.msra.mxu0 %v225
    %269 = vmatpush.bf16.msra.mxu0 %v224
    %270 = vmatpush.bf16.msra.mxu0 %v223
    %271 = vmatpush.bf16.msra.mxu0 %v222
    %272 = vmatpush.bf16.msra.mxu0 %v221
    %273 = vmatpush.bf16.msra.mxu0 %v220
    %274 = vmatpush.bf16.msra.mxu0 %v219
    %275 = vmatmul.bf16.gmra.mxu0 %v68
    %v276 = vpop.f32.mrf.mxu0
    %v277 = vadd.f32 %v121, %v276
    %v278 = vpop.f32.mrf.mxu0
    %279 = vdwg.mxu0
    %280 = vmatpush.bf16.msra.mxu0 %v234
    %281 = vmatpush.bf16.msra.mxu0 %v233
    %282 = vmatpush.bf16.msra.mxu0 %v232
    %283 = vmatpush.bf16.msra.mxu0 %v231
    %284 = vmatpush.bf16.msra.mxu0 %v230
    %285 = vmatpush.bf16.msra.mxu0 %v229
    %286 = vmatpush.bf16.msra.mxu0 %v228
    %287 = vmatpush.bf16.msra.mxu0 %v227
    %288 = vmatmul.bf16.gmra.mxu0 %v69
    %v289 = vpop.f32.mrf.mxu0
    %v290 = vadd.f32 %v277, %v289
    %v291 = vpop.f32.mrf.mxu0
    %292 = vdwg.mxu0
    %293 = vmatpush.bf16.msra.mxu0 %v242
    %294 = vmatpush.bf16.msra.mxu0 %v241
    %295 = vmatpush.bf16.msra.mxu0 %v240
    %296 = vmatpush.bf16.msra.mxu0 %v239
    %297 = vmatpush.bf16.msra.mxu0 %v238
    %298 = vmatpush.bf16.msra.mxu0 %v237
    %299 = vmatpush.bf16.msra.mxu0 %v236
    %300 = vmatpush.bf16.msra.mxu0 %v235
    %301 = vmatmul.bf16.gmra.mxu0 %v70
    %v302 = vpop.f32.mrf.mxu0
    %v303 = vadd.f32 %v290, %v302
    %v304 = vpop.f32.mrf.mxu0
    %305 = vdwg.mxu0
    %v306 = vmax.f32 %v303, 0.0
    %307 = vst [vmem:[#allocation7] sm:$0xff] %v306
    // Predicated region
    $region22: #{tpu_custom_call.1} parent=1 // pred_check
      _
    $region23: #{tpu_custom_call.1} parent=1 // pred_check_branch
      %309 = sbr.rel (0) target = $region25
    $region24: #{tpu_custom_call.1} parent=1 // pred_region
      %311 = vsyncadd [#allocation4], 64
      %s312 = sshll.u32 [#allocation7], 4
      %s313 = int_to_ptr.vmem [resolvable:$true] %s312
      %s314 = sshll.u32 %s3, 4
      %s315 = int_to_ptr.hbm [resolvable:$true] %s314
      %320 = dma.vmem_to_hbm [thread:$0]  %s313, 64, %s315, [#allocation4], 64, 64, 4
    $region25: #{tpu_custom_call.1} parent=1 // pred_fallthru
      _
    // Predicated region
    $region26: #{tpu_custom_call.1} parent=1 // pred_check
      _
    $region27: #{tpu_custom_call.1} parent=1 // pred_check_branch
      %322 = sbr.rel (0) target = $region29
    $region28: #{tpu_custom_call.1} parent=1 // pred_region
      %324 = dma.done [#allocation4], 128
    $region29: #{tpu_custom_call.1} parent=1 // pred_fallthru
      _
    %325 = vsyncpa [#allocation3], 1
    %326 = vsyncpa [#allocation6], 1
    %327 = vsyncpa [#allocation4], 1

</llo_original>
